<compile_context>
chip_gen: v7x
topology: tpu7x:2x2x1
jax: 0.10.0
libtpu: 0.0.40
codegen_flags: <defaults>
</compile_context>

<pallas_src>
import jax
import jax.numpy as jnp
from jax.experimental import pallas as pl
from jax.experimental.pallas import tpu as pltpu


def critic_kernel(x_ref, w1_ref, b1_ref, w2_ref, b2_ref, w3_ref, b3_ref, o_ref):
    # x: (TB, D) f32 streamed tile -> bf16 for the MXU (f32 accumulation).
    x = x_ref[...].astype(jnp.bfloat16)

    # Layer 1: (TB, D) @ (D, H); bias-add + ReLU in f32 on the VPU.
    h1 = jnp.dot(x, w1_ref[...], preferred_element_type=jnp.float32)
    h1 = jnp.maximum(h1 + b1_ref[...], 0.0)

    # Layer 2: (TB, H) @ (H, H) — the dominant matmul.
    h2 = jnp.dot(h1.astype(jnp.bfloat16), w2_ref[...],
                 preferred_element_type=jnp.float32)
    h2 = jnp.maximum(h2 + b2_ref[...], 0.0)

    # Layer 3: (TB, H) @ (H, 1) on the MXU.  N=1 wastes MXU lanes, but the MXU is not
    # the binding slot in this kernel, whereas a cross-lane sum would load the XLU.
    out = jnp.dot(h2.astype(jnp.bfloat16), w3_ref[...],
                  preferred_element_type=jnp.float32)
    o_ref[...] = (out + b3_ref[0]).astype(o_ref.dtype)


def _choose_batch_tile(B, block_b):
    """Pick TB: multiple of 8 (or full B), large enough to amortize per-step overhead,
    and giving >= 2 grid tiles when B is big enough (so v7x's 2 TCs both get work)."""
    if B > block_b:
        return block_b
    # Whole batch fits in one tile; try splitting into two 8-aligned tiles.
    half = -(-B // 2)                 # ceil(B/2)
    half8 = -(-half // 8) * 8         # round up to multiple of 8
    if 8 <= half8 < B:
        return half8
    return B


def critic_forward(x, params, *, block_b=2048):
    """x: (B, state_dim) f32.  params: dict w1,b1,w2,b2,w3,b3 with w_i transposed vs
    torch (in, out) and stored in bf16; biases f32.  Returns (B, 1) f32."""
    w1, b1, w2, b2, w3, b3 = (params[k] for k in ("w1", "b1", "w2", "b2", "w3", "b3"))
    B, D = x.shape
    H = w1.shape[1]

    TB = _choose_batch_tile(B, block_b)
    grid = (pl.cdiv(B, TB),)

    const = lambda shape: pl.BlockSpec(shape, lambda i: (0, 0))   # grid-resident params

    flops = 2 * B * (D * H + H * H + H)
    bytes_accessed = (4 * (B * D + B)                 # x read + out write (f32)
                      + 2 * (D * H + H * H + H)       # bf16 weights
                      + 4 * (2 * H + 1))              # f32 biases

    # Rough VMEM footprint: double-buffered x/out tiles + (conservatively) doubled
    # resident params + f32/bf16 (TB, H) intermediates.  Only override the scoped
    # default when we would exceed it; cap under v7x's 64 MiB physical.
    vmem_est = (2 * TB * D * 4 + 2 * TB * 4
                + 2 * (2 * (D * H + H * H + H) + 4 * 2 * H)
                + 2 * TB * H * (4 + 2))
    vmem_limit = None
    if vmem_est > (28 << 20):
        vmem_limit = min(int(vmem_est * 5 // 4), 60 << 20)

    return pl.pallas_call(
        critic_kernel,
        out_shape=jax.ShapeDtypeStruct((B, 1), jnp.float32),
        grid=grid,
        in_specs=[
            pl.BlockSpec((TB, D), lambda i: (i, 0)),              # x: tiled over batch
            const((D, H)),                                        # w1 (bf16)
            const((1, H)),                                        # b1 (f32)
            const((H, H)),                                        # w2 (bf16)
            const((1, H)),                                        # b2 (f32)
            const((H, 1)),                                        # w3 (bf16, column)
            pl.BlockSpec(memory_space=pltpu.MemorySpace.SMEM),    # b3: (1,) f32 scalar
        ],
        out_specs=pl.BlockSpec((TB, 1), lambda i: (i, 0)),
        compiler_params=pltpu.CompilerParams(
            dimension_semantics=("parallel",),                    # shard batch tiles
            vmem_limit_bytes=vmem_limit),
        cost_estimate=pl.CostEstimate(
            flops=flops, transcendentals=0, bytes_accessed=bytes_accessed),
    )(x, w1, b1, w2, b2, w3, b3)


def init_critic_params(key, state_dim, hidden_size=256):
    """PyTorch-Linear-style init U(-1/sqrt(fan_in), +1/sqrt(fan_in)); weights are cast
    to bf16 once here (the MXU consumes bf16 anyway), biases stay f32."""
    ks = jax.random.split(key, 6)

    def lin(kw, kb, fan_in, fan_out):
        bound = 1.0 / jnp.sqrt(jnp.float32(fan_in))
        w = jax.random.uniform(kw, (fan_in, fan_out), jnp.float32, -bound, bound)
        b = jax.random.uniform(kb, (fan_out,), jnp.float32, -bound, bound)
        return w, b

    w1, b1 = lin(ks[0], ks[1], state_dim, hidden_size)
    w2, b2 = lin(ks[2], ks[3], hidden_size, hidden_size)
    w3, b3 = lin(ks[4], ks[5], hidden_size, 1)
    return {
        "w1": w1.astype(jnp.bfloat16), "b1": b1.reshape(1, hidden_size),
        "w2": w2.astype(jnp.bfloat16), "b2": b2.reshape(1, hidden_size),
        "w3": w3.astype(jnp.bfloat16),            # (H, 1) column for the MXU
        "b3": b3,                                  # (1,) f32 scalar -> SMEM
    }


if __name__ == "__main__":
    key = jax.random.PRNGKey(0)
    k_x, k_p = jax.random.split(key)

    batch = 8
    state_dim = 16
    hidden_size = 32

    x = jax.random.normal(k_x, (batch, state_dim), dtype=jnp.float32)
    params = init_critic_params(k_p, state_dim, hidden_size)

    out = jax.block_until_ready(critic_forward(x, params))

    # Reference with matching bf16 matmul operands / f32 accumulation (tight tolerance).
    def ref_bf16(x, p):
        bf = jnp.bfloat16
        h = jnp.maximum(jnp.dot(x.astype(bf), p["w1"],
                                preferred_element_type=jnp.float32) + p["b1"], 0.0)
        h = jnp.maximum(jnp.dot(h.astype(bf), p["w2"],
                                preferred_element_type=jnp.float32) + p["b2"], 0.0)
        o = jnp.dot(h.astype(bf), p["w3"], preferred_element_type=jnp.float32)
        return o + p["b3"][0]

    expected = ref_bf16(x, params)
    assert out.shape == (batch, 1)
    assert jnp.allclose(out, expected, atol=2e-3, rtol=2e-3), (
        float(jnp.max(jnp.abs(out - expected))))

    # Sanity check vs. the full-f32 PyTorch-equivalent forward (loose tol for bf16).
    def ref_f32(x, p):
        w1 = p["w1"].astype(jnp.float32); w2 = p["w2"].astype(jnp.float32)
        w3 = p["w3"].astype(jnp.float32)
        h = jnp.maximum(x @ w1 + p["b1"], 0.0)
        h = jnp.maximum(h @ w2 + p["b2"], 0.0)
        return h @ w3 + p["b3"][0]

    assert jnp.allclose(out, ref_f32(x, params), atol=5e-2, rtol=5e-2)

    print("KERNEL_OK")
</pallas_src>

<mosaic_0001>
module attributes {stable_mosaic.version = 11 : i64} {
  func.func @critic_kernel(%arg0: i32, %arg1: memref<8x16xf32, #tpu.memory_space<vmem>>, %arg2: memref<16x32xbf16, #tpu.memory_space<vmem>>, %arg3: memref<1x32xf32, #tpu.memory_space<vmem>>, %arg4: memref<32x32xbf16, #tpu.memory_space<vmem>>, %arg5: memref<1x32xf32, #tpu.memory_space<vmem>>, %arg6: memref<32x1xbf16, #tpu.memory_space<vmem>>, %arg7: memref<1xf32, #tpu.memory_space<smem>>, %arg8: memref<8x1xf32, #tpu.memory_space<vmem>>) attributes {dimension_semantics = [#tpu.dimension_semantics<parallel>], iteration_bounds = array<i64: 1>, scalar_prefetch = 0 : i64, scratch_operands = 0 : i64, tpu.core_type = #tpu.core_type<tc>, window_params = [{transform_indices = @transform_0, window_bounds = array<i64: 8, 16>}, {pipeline_mode = #tpu.pipeline_mode<synchronous>, transform_indices = @transform_1, window_bounds = array<i64: 16, 32>}, {pipeline_mode = #tpu.pipeline_mode<synchronous>, transform_indices = @transform_2, window_bounds = array<i64: 1, 32>}, {pipeline_mode = #tpu.pipeline_mode<synchronous>, transform_indices = @transform_3, window_bounds = array<i64: 32, 32>}, {pipeline_mode = #tpu.pipeline_mode<synchronous>, transform_indices = @transform_4, window_bounds = array<i64: 1, 32>}, {pipeline_mode = #tpu.pipeline_mode<synchronous>, transform_indices = @transform_5, window_bounds = array<i64: 32, 1>}, {transform_indices = @transform_6, window_bounds = array<i64: 1>}, {transform_indices = @transform_7, window_bounds = array<i64: 8, 1>}]} {
    %c0 = arith.constant 0 : index
    %c0_0 = arith.constant 0 : index
    %0 = vector.load %arg1[%c0, %c0_0] : memref<8x16xf32, #tpu.memory_space<vmem>>, vector<8x16xf32>
    %1 = arith.truncf %0 : vector<8x16xf32> to vector<8x16xbf16>
    %c0_1 = arith.constant 0 : index
    %c0_2 = arith.constant 0 : index
    %2 = vector.load %arg2[%c0_1, %c0_2] : memref<16x32xbf16, #tpu.memory_space<vmem>>, vector<16x32xbf16>
    %cst = arith.constant dense<0.000000e+00> : vector<8x32xf32>
    %3 = tpu.matmul %1, %2, %cst {dimension_numbers = #tpu.dot_dimension_numbers<[1], [0], [0], [1], [0, 0, 1, 1], [], []>} : vector<8x16xbf16>, vector<16x32xbf16>, vector<8x32xf32> -> vector<8x32xf32>
    %c0_3 = arith.constant 0 : index
    %c0_4 = arith.constant 0 : index
    %4 = vector.load %arg3[%c0_3, %c0_4] : memref<1x32xf32, #tpu.memory_space<vmem>>, vector<1x32xf32>
    %5 = vector.broadcast %4 : vector<1x32xf32> to vector<8x32xf32>
    %6 = arith.addf %3, %5 : vector<8x32xf32>
    %cst_5 = arith.constant 0.000000e+00 : f32
    %7 = vector.broadcast %cst_5 : f32 to vector<8x32xf32>
    %8 = arith.maximumf %6, %7 : vector<8x32xf32>
    %9 = arith.truncf %8 : vector<8x32xf32> to vector<8x32xbf16>
    %c0_6 = arith.constant 0 : index
    %c0_7 = arith.constant 0 : index
    %10 = vector.load %arg4[%c0_6, %c0_7] : memref<32x32xbf16, #tpu.memory_space<vmem>>, vector<32x32xbf16>
    %cst_8 = arith.constant dense<0.000000e+00> : vector<8x32xf32>
    %11 = tpu.matmul %9, %10, %cst_8 {dimension_numbers = #tpu.dot_dimension_numbers<[1], [0], [0], [1], [0, 0, 1, 1], [], []>} : vector<8x32xbf16>, vector<32x32xbf16>, vector<8x32xf32> -> vector<8x32xf32>
    %c0_9 = arith.constant 0 : index
    %c0_10 = arith.constant 0 : index
    %12 = vector.load %arg5[%c0_9, %c0_10] : memref<1x32xf32, #tpu.memory_space<vmem>>, vector<1x32xf32>
    %13 = vector.broadcast %12 : vector<1x32xf32> to vector<8x32xf32>
    %14 = arith.addf %11, %13 : vector<8x32xf32>
    %cst_11 = arith.constant 0.000000e+00 : f32
    %15 = vector.broadcast %cst_11 : f32 to vector<8x32xf32>
    %16 = arith.maximumf %14, %15 : vector<8x32xf32>
    %17 = arith.truncf %16 : vector<8x32xf32> to vector<8x32xbf16>
    %c0_12 = arith.constant 0 : index
    %c0_13 = arith.constant 0 : index
    %18 = vector.load %arg6[%c0_12, %c0_13] : memref<32x1xbf16, #tpu.memory_space<vmem>>, vector<32x1xbf16>
    %cst_14 = arith.constant dense<0.000000e+00> : vector<8x1xf32>
    %19 = tpu.matmul %17, %18, %cst_14 {dimension_numbers = #tpu.dot_dimension_numbers<[1], [0], [0], [1], [0, 0, 1, 1], [], []>} : vector<8x32xbf16>, vector<32x1xbf16>, vector<8x1xf32> -> vector<8x1xf32>
    %c0_15 = arith.constant 0 : index
    %20 = memref.load %arg7[%c0_15] : memref<1xf32, #tpu.memory_space<smem>>
    %21 = vector.broadcast %20 : f32 to vector<8x1xf32>
    %22 = arith.addf %19, %21 : vector<8x1xf32>
    %c0_16 = arith.constant 0 : index
    %c0_17 = arith.constant 0 : index
    %23 = vector.load %arg8[%c0_16, %c0_17] : memref<8x1xf32, #tpu.memory_space<vmem>>, vector<8x1xf32>
    tpu.vector_store %arg8[%c0_16, %c0_17], %22 {strides = array<i32>} : memref<8x1xf32, #tpu.memory_space<vmem>>, vector<8x1xf32>,
    return
  }
  func.func @transform_0(%arg0: i32) -> (i32, i32) {
    %c0_i32 = arith.constant 0 : i32
    %c0_i32_0 = arith.constant 0 : i32
    return %arg0, %c0_i32 : i32, i32
  }
  func.func @transform_1(%arg0: i32) -> (i32, i32) {
    %c0_i32 = arith.constant 0 : i32
    %c0_i32_0 = arith.constant 0 : i32
    %c0_i32_1 = arith.constant 0 : i32
    return %c0_i32, %c0_i32_0 : i32, i32
  }
  func.func @transform_2(%arg0: i32) -> (i32, i32) {
    %c0_i32 = arith.constant 0 : i32
    %c0_i32_0 = arith.constant 0 : i32
    %c0_i32_1 = arith.constant 0 : i32
    return %c0_i32, %c0_i32_0 : i32, i32
  }
  func.func @transform_3(%arg0: i32) -> (i32, i32) {
    %c0_i32 = arith.constant 0 : i32
    %c0_i32_0 = arith.constant 0 : i32
    %c0_i32_1 = arith.constant 0 : i32
    return %c0_i32, %c0_i32_0 : i32, i32
  }
  func.func @transform_4(%arg0: i32) -> (i32, i32) {
    %c0_i32 = arith.constant 0 : i32
    %c0_i32_0 = arith.constant 0 : i32
    %c0_i32_1 = arith.constant 0 : i32
    return %c0_i32, %c0_i32_0 : i32, i32
  }
  func.func @transform_5(%arg0: i32) -> (i32, i32) {
    %c0_i32 = arith.constant 0 : i32
    %c0_i32_0 = arith.constant 0 : i32
    %c0_i32_1 = arith.constant 0 : i32
    return %c0_i32, %c0_i32_0 : i32, i32
  }
  func.func @transform_6(%arg0: i32) -> i32 {
    %c0_i32 = arith.constant 0 : i32
    %c0_i32_0 = arith.constant 0 : i32
    return %c0_i32 : i32
  }
  func.func @transform_7(%arg0: i32) -> (i32, i32) {
    %c0_i32 = arith.constant 0 : i32
    %c0_i32_0 = arith.constant 0 : i32
    return %arg0, %c0_i32 : i32, i32
  }
}

</mosaic_0001>

<llo_original>
// kernel: tpu_custom_call.1
$region0: #{tpu_custom_call.1}
  #allocation0 [shape = 'u32[]', space=smem, size = 0x4, offset = 0x4, fixed_abs, tag = 'smem constant byte address 0x4 - core index']
  #allocation1 [shape = 'u32[144,128]{1,0:T(1,128)}', space=vmem, size = 0x12000, scoped, tag = 'internal scratch']
  #allocation2 [shape = 'f32[1]{0:T(128)S(6)}', space=smem, size = 0x200, scoped, tag = 'scoped memory for tpu_custom_call.1']
  %s0 = inlined_call_operand.vmem [shape: f32[8,16], index: 0, kind: input, shape index: {}]
  %s1 = inlined_call_operand.vmem [shape: bf16[16,32], index: 1, kind: input, shape index: {}]
  %s2 = inlined_call_operand.hbm [shape: f32[1,32], index: 2, kind: input, shape index: {}]
  %s3 = inlined_call_operand.vmem [shape: bf16[32,32], index: 3, kind: input, shape index: {}]
  %s4 = inlined_call_operand.vmem [shape: f32[1,32], index: 4, kind: input, shape index: {}]
  %s5 = inlined_call_operand.vmem [shape: bf16[32,1], index: 5, kind: input, shape index: {}]
  %s6 = inlined_call_operand.<no memory space> [shape: f32[1], index: 6, kind: input, shape index: {}]
  %s7 = inlined_call_operand.vmem [shape: f32[8,1], index: 7, kind: output, shape index: {}]
  %s8 = sld [smem:[#allocation0]]
  $region42: #{tpu_custom_call.1} parent=0
    _
  %s10 = ssub.s32 1, %s8
  %s11 = scalar_select 0, %s10, %s8
  %12 = sst [smem:[#allocation2]] %s6
  $region1: #{tpu_custom_call.1} parent=0
    #allocation3 [shape = 'u8[512]{0}', space=vmem, size = 0x400, scoped, tag = 'input window, operand 2, single buffered']
    #allocation4 [shape = 's32[1]{0}', space=sflag, size = 0x4, scoped, tag = 'scoped memory for tpu_custom_call.1']
    %13 = vsyncpa [#allocation4], 0
    // Predicated region
    $region2: #{tpu_custom_call.1} parent=1 // pred_check
      _
    $region3: #{tpu_custom_call.1} parent=1 // pred_check_branch
      %15 = sbr.rel (0) target = $region5
    $region4: #{tpu_custom_call.1} parent=1 // pred_region
      _
    $region5: #{tpu_custom_call.1} parent=1 // pred_fallthru
      _
    // Predicated region
    $region6: #{tpu_custom_call.1} parent=1 // pred_check
      _
    $region7: #{tpu_custom_call.1} parent=1 // pred_check_branch
      %17 = sbr.rel (0) target = $region9
    $region8: #{tpu_custom_call.1} parent=1 // pred_region
      _
    $region9: #{tpu_custom_call.1} parent=1 // pred_fallthru
      _
    // Predicated region
    $region10: #{tpu_custom_call.1} parent=1 // pred_check
      _
    $region11: #{tpu_custom_call.1} parent=1 // pred_check_branch
      %19 = sbr.rel (0) target = $region13
    $region12: #{tpu_custom_call.1} parent=1 // pred_region
      %s21 = ssub.s32 16, 16
      %22 = vsyncadd [#allocation4], %s21
      %s24 = sshll.u32 [#allocation3], 4
      %s25 = int_to_ptr.vmem [resolvable:$true] %s24
      %27 = dma.hbm_to_vmem [thread:$0]  %s2, 16, %s25, [#allocation4]
    $region13: #{tpu_custom_call.1} parent=1 // pred_fallthru
      _
    // Predicated region
    $region14: #{tpu_custom_call.1} parent=1 // pred_check
      _
    $region15: #{tpu_custom_call.1} parent=1 // pred_check_branch
      %29 = sbr.rel (0) target = $region17
    $region16: #{tpu_custom_call.1} parent=1 // pred_region
      _
    $region17: #{tpu_custom_call.1} parent=1 // pred_fallthru
      _
    // Predicated region
    $region18: #{tpu_custom_call.1} parent=1 // pred_check
      _
    $region19: #{tpu_custom_call.1} parent=1 // pred_check_branch
      %31 = sbr.rel (0) target = $region21
    $region20: #{tpu_custom_call.1} parent=1 // pred_region
      _
    $region21: #{tpu_custom_call.1} parent=1 // pred_fallthru
      _
    // Predicated region
    $region22: #{tpu_custom_call.1} parent=1 // pred_check
      _
    $region23: #{tpu_custom_call.1} parent=1 // pred_check_branch
      %33 = sbr.rel (0) target = $region25
    $region24: #{tpu_custom_call.1} parent=1 // pred_region
      _
    $region25: #{tpu_custom_call.1} parent=1 // pred_fallthru
      _
    // Predicated region
    $region26: #{tpu_custom_call.1} parent=1 // pred_check
      _
    $region27: #{tpu_custom_call.1} parent=1 // pred_check_branch
      %35 = sbr.rel (0) target = $region29
    $region28: #{tpu_custom_call.1} parent=1 // pred_region
      _
    $region29: #{tpu_custom_call.1} parent=1 // pred_fallthru
      _
    // Predicated region
    $region30: #{tpu_custom_call.1} parent=1 // pred_check
      _
    $region31: #{tpu_custom_call.1} parent=1 // pred_check_branch
      %37 = sbr.rel (0) target = $region33
    $region32: #{tpu_custom_call.1} parent=1 // pred_region
      %38 = dma.done [#allocation4], 16
    $region33: #{tpu_custom_call.1} parent=1 // pred_fallthru
      _
    %v40 = vld [vmem:[%s0] sm:$0xff]
    %v41 = vpack.c.bf16 %v40, %v40
    %v42 = vld [vmem:[%s1] sm:$0xf]
    %v43 = vld [vmem:[%s1 + $0x4] sm:$0xf]
    %v44 = vld [vmem:[#allocation3] sm:$0x1]
    %v46 = vlaneseq
    %v47 = vshrl.u32 %v46, 7
    %v48 = vsub.s32 0, %v47
    %v49 = vrot.slane %v44, %v48
    %v53 = vunpack.c.l.b16 %v42
    %v54 = vunpack.c.l.b16 %v43
    %v55 = vpack.c.b16 %v54, %v53
    %vm57 = vcmask 130048
    %v59 = vsel %vm57, %v41, 0
    %61 = vmatprep.subr.bf16.mxu0 0
    %62 = vmatpush1.bf16.msra.mxu0 %v55
    %63 = vmatprep.subr.bf16.mxu0 0
    %64 = vmatpush1.bf16.msra.mxu0 0
    %65 = vmatprep.subr.bf16.mxu0 0
    %66 = vmatpush1.bf16.msra.mxu0 0
    %67 = vmatprep.subr.bf16.mxu0 0
    %68 = vmatpush1.bf16.msra.mxu0 0
    %69 = vmatprep.subr.bf16.mxu0 0
    %70 = vmatpush1.bf16.msra.mxu0 0
    %71 = vmatprep.subr.bf16.mxu0 0
    %72 = vmatpush1.bf16.msra.mxu0 0
    %73 = vmatprep.subr.bf16.mxu0 0
    %74 = vmatpush1.bf16.msra.mxu0 0
    %75 = vmatprep.subr.bf16.mxu0 0
    %76 = vmatpush1.bf16.msra.mxu0 0
    %77 = vmatprep.subr.bf16.mxu0 0
    %78 = vmatpush1.bf16.msra.mxu0 0
    %79 = vmatprep.subr.bf16.mxu0 0
    %80 = vmatpush1.bf16.msra.mxu0 0
    %81 = vmatprep.subr.bf16.mxu0 0
    %82 = vmatpush1.bf16.msra.mxu0 0
    %83 = vmatprep.subr.bf16.mxu0 0
    %84 = vmatpush1.bf16.msra.mxu0 0
    %85 = vmatprep.subr.bf16.mxu0 0
    %86 = vmatpush1.bf16.msra.mxu0 0
    %87 = vmatprep.subr.bf16.mxu0 0
    %88 = vmatpush1.bf16.msra.mxu0 0
    %89 = vmatprep.subr.bf16.mxu0 0
    %90 = vmatpush1.bf16.msra.mxu0 0
    %91 = vmatprep.subr.bf16.mxu0 0
    %92 = vmatpush1.bf16.msra.mxu0 0
    %93 = vmatprep.mubr.bf16.mxu0 0
    %94 = vmatmul.mubr.bf16.gmra.mrb[0].mxu0 %v59
    %v95 = vpop.f32.mrb[0].mxu0
    %v96 = vadd.f32 %v49, %v95
    %v97 = vpop.f32.mrb[0].mxu0
    %v98 = vpop.f32.mrb[0].mxu0
    %v99 = vpop.f32.mrb[0].mxu0
    %100 = vdwg.mxu0
    %v101 = vmax.f32 %v96, 0.0
    %v102 = vpack.c.bf16 %v101, %v101
    %v103 = vld [vmem:[%s3] sm:$0xf]
    %v104 = vld [vmem:[%s3 + $0x4] sm:$0xf]
    %v105 = vld [vmem:[%s3 + $0x8] sm:$0xf]
    %v106 = vld [vmem:[%s3 + $0xc] sm:$0xf]
    %v107 = vld [vmem:[%s4] sm:$0x1]
    %v109 = vlaneseq
    %v110 = vshrl.u32 %v109, 7
    %v111 = vsub.s32 0, %v110
    %v112 = vrot.slane %v107, %v111
    %v118 = vunpack.c.l.b16 %v103
    %v119 = vunpack.c.l.b16 %v104
    %v120 = vunpack.c.l.b16 %v105
    %v121 = vunpack.c.l.b16 %v106
    %v122 = vpack.c.b16 %v119, %v118
    %v123 = vpack.c.b16 %v121, %v120
    %vm126 = vcmask 261120
    %v128 = vsel %vm126, %v102, 0
    %130 = vmatprep.subr.bf16.mxu0 0
    %131 = vmatpush1.bf16.msra.mxu0 %v122
    %132 = vmatprep.subr.bf16.mxu0 0
    %133 = vmatpush1.bf16.msra.mxu0 %v123
    %134 = vmatprep.subr.bf16.mxu0 0
    %135 = vmatpush1.bf16.msra.mxu0 0
    %136 = vmatprep.subr.bf16.mxu0 0
    %137 = vmatpush1.bf16.msra.mxu0 0
    %138 = vmatprep.subr.bf16.mxu0 0
    %139 = vmatpush1.bf16.msra.mxu0 0
    %140 = vmatprep.subr.bf16.mxu0 0
    %141 = vmatpush1.bf16.msra.mxu0 0
    %142 = vmatprep.subr.bf16.mxu0 0
    %143 = vmatpush1.bf16.msra.mxu0 0
    %144 = vmatprep.subr.bf16.mxu0 0
    %145 = vmatpush1.bf16.msra.mxu0 0
    %146 = vmatprep.subr.bf16.mxu0 0
    %147 = vmatpush1.bf16.msra.mxu0 0
    %148 = vmatprep.subr.bf16.mxu0 0
    %149 = vmatpush1.bf16.msra.mxu0 0
    %150 = vmatprep.subr.bf16.mxu0 0
    %151 = vmatpush1.bf16.msra.mxu0 0
    %152 = vmatprep.subr.bf16.mxu0 0
    %153 = vmatpush1.bf16.msra.mxu0 0
    %154 = vmatprep.subr.bf16.mxu0 0
    %155 = vmatpush1.bf16.msra.mxu0 0
    %156 = vmatprep.subr.bf16.mxu0 0
    %157 = vmatpush1.bf16.msra.mxu0 0
    %158 = vmatprep.subr.bf16.mxu0 0
    %159 = vmatpush1.bf16.msra.mxu0 0
    %160 = vmatprep.subr.bf16.mxu0 0
    %161 = vmatpush1.bf16.msra.mxu0 0
    %162 = vmatprep.mubr.bf16.mxu0 0
    %163 = vmatmul.mubr.bf16.gmra.mrb[0].mxu0 %v128
    %v164 = vpop.f32.mrb[0].mxu0
    %v165 = vadd.f32 %v112, %v164
    %v166 = vpop.f32.mrb[0].mxu0
    %v167 = vpop.f32.mrb[0].mxu0
    %v168 = vpop.f32.mrb[0].mxu0
    %169 = vdwg.mxu0
    %v170 = vmax.f32 %v165, 0.0
    %v171 = vpack.c.bf16 %v170, %v170
    %v172 = vld [vmem:[%s5] sm:$0xf]
    %v173 = vld [vmem:[%s5 + $0x4] sm:$0xf]
    %v174 = vld [vmem:[%s5 + $0x8] sm:$0xf]
    %v175 = vld [vmem:[%s5 + $0xc] sm:$0xf]
    %s176 = sld [smem:[#allocation2]]
    %v177 = vstv %s176
    %v182 = vunpack.c.l.b16 %v172
    %v183 = vunpack.c.l.b16 %v173
    %v184 = vunpack.c.l.b16 %v174
    %v185 = vunpack.c.l.b16 %v175
    %v186 = vpack.c.b16 %v183, %v182
    %v187 = vpack.c.b16 %v185, %v184
    %v191 = vsel %vm126, %v171, 0
    %193 = vmatprep.subr.bf16.mxu0 0
    %194 = vmatpush1.bf16.msra.mxu0 %v186
    %195 = vmatprep.subr.bf16.mxu0 0
    %196 = vmatpush1.bf16.msra.mxu0 %v187
    %197 = vmatprep.subr.bf16.mxu0 0
    %198 = vmatpush1.bf16.msra.mxu0 0
    %199 = vmatprep.subr.bf16.mxu0 0
    %200 = vmatpush1.bf16.msra.mxu0 0
    %201 = vmatprep.subr.bf16.mxu0 0
    %202 = vmatpush1.bf16.msra.mxu0 0
    %203 = vmatprep.subr.bf16.mxu0 0
    %204 = vmatpush1.bf16.msra.mxu0 0
    %205 = vmatprep.subr.bf16.mxu0 0
    %206 = vmatpush1.bf16.msra.mxu0 0
    %207 = vmatprep.subr.bf16.mxu0 0
    %208 = vmatpush1.bf16.msra.mxu0 0
    %209 = vmatprep.subr.bf16.mxu0 0
    %210 = vmatpush1.bf16.msra.mxu0 0
    %211 = vmatprep.subr.bf16.mxu0 0
    %212 = vmatpush1.bf16.msra.mxu0 0
    %213 = vmatprep.subr.bf16.mxu0 0
    %214 = vmatpush1.bf16.msra.mxu0 0
    %215 = vmatprep.subr.bf16.mxu0 0
    %216 = vmatpush1.bf16.msra.mxu0 0
    %217 = vmatprep.subr.bf16.mxu0 0
    %218 = vmatpush1.bf16.msra.mxu0 0
    %219 = vmatprep.subr.bf16.mxu0 0
    %220 = vmatpush1.bf16.msra.mxu0 0
    %221 = vmatprep.subr.bf16.mxu0 0
    %222 = vmatpush1.bf16.msra.mxu0 0
    %223 = vmatprep.subr.bf16.mxu0 0
    %224 = vmatpush1.bf16.msra.mxu0 0
    %225 = vmatprep.mubr.bf16.mxu0 0
    %226 = vmatmul.mubr.bf16.gmra.mrb[0].mxu0 %v191
    %v227 = vpop.f32.mrb[0].mxu0
    %v228 = vadd.f32 %v177, %v227
    %v229 = vpop.f32.mrb[0].mxu0
    %v230 = vpop.f32.mrb[0].mxu0
    %v231 = vpop.f32.mrb[0].mxu0
    %232 = vdwg.mxu0
    %vm233 = vcmask 7168
    %234 = vst.msk [vmem:[%s7] sm:$0xff] %vm233, %v228
    // Predicated region
    $region34: #{tpu_custom_call.1} parent=1 // pred_check
      _
    $region35: #{tpu_custom_call.1} parent=1 // pred_check_branch
      %236 = sbr.rel (0) target = $region37
    $region36: #{tpu_custom_call.1} parent=1 // pred_region
      _
    $region37: #{tpu_custom_call.1} parent=1 // pred_fallthru
      _
    // Predicated region
    $region38: #{tpu_custom_call.1} parent=1 // pred_check
      _
    $region39: #{tpu_custom_call.1} parent=1 // pred_check_branch
      %238 = sbr.rel (0) target = $region41
    $region40: #{tpu_custom_call.1} parent=1 // pred_region
      _
    $region41: #{tpu_custom_call.1} parent=1 // pred_fallthru
      _
    %239 = vsyncpa [#allocation4], 1

</llo_original>
